<compile_context>
chip_gen: v5e
topology: v5e:2x2
jax: 0.10.0
libtpu: 0.0.40
codegen_flags: <defaults>
</compile_context>

<pallas_src>
import jax
import jax.numpy as jnp
from jax.experimental import pallas as pl
from jax.experimental.pallas import tpu as pltpu

NUM_BOND_TYPE = 6
NUM_BOND_DIRECTION = 3
LANE = 128


def _round_up(x, m):
    return (x + m - 1) // m * m


# --------------------------------------------------------------------------
# Kernel 1: h = mask * (PReLU(x) @ Wenc), masked rows hard-zeroed, bf16 out.
# --------------------------------------------------------------------------
def encode_kernel(a_ref, x_ref, wenc_ref, mask_ref, h_ref):
    a = a_ref[0]                                  # PReLU scalar from SMEM
    x = x_ref[...]
    act = jnp.where(x > 0, x, a * x)
    h = jnp.dot(act, wenc_ref[...], preferred_element_type=jnp.float32)
    # hard overwrite (like x[mask]=0 in torch) -> no NaN/Inf propagation
    h = jnp.where(mask_ref[...] > 0, h, 0.0)
    h_ref[...] = h.astype(h_ref.dtype)


# --------------------------------------------------------------------------
# Kernel 2: out_row_tile = MLP( sum_k A[i,k] @ h[k] + e_sum[i] )
#   grid = (row tiles, K tiles); K (contraction over source nodes) is the last
#   "arbitrary" axis; accumulation lives in a VMEM f32 scratch.
# --------------------------------------------------------------------------
def aggregate_mlp_kernel(adj_ref, h_ref, esum_ref, w1_ref, b1_ref,
                         w2_ref, b2_ref, out_ref, acc_ref):
    k = pl.program_id(1)

    @pl.when(k == 0)
    def _():
        acc_ref[...] = esum_ref[...].astype(jnp.float32)

    acc_ref[...] += jnp.dot(adj_ref[...], h_ref[...],
                            preferred_element_type=jnp.float32)

    @pl.when(k == pl.num_programs(1) - 1)
    def _():
        hid = jnp.dot(acc_ref[...], w1_ref[...],
                      preferred_element_type=jnp.float32) + b1_ref[...]
        hid = jnp.maximum(hid, 0.0)
        out_ref[...] = (jnp.dot(hid, w2_ref[...],
                                preferred_element_type=jnp.float32)
                        + b2_ref[...]).astype(out_ref.dtype)


# --------------------------------------------------------------------------
# Planning helpers
# --------------------------------------------------------------------------
def _chip_config():
    """Per-generation row tile and VMEM limit."""
    kind = ""
    try:
        kind = jax.devices()[0].device_kind.lower()
    except Exception:
        pass
    is_v5e = ("v5e" in kind) or ("v5 lite" in kind) or ("v5litepod" in kind)
    big_vmem = ("v5" in kind) or ("v6" in kind)      # 128 MiB VMEM generations
    tm = 128 if is_v5e else 256                      # v6e/v7x MXU is 2x256x256
    vmem_limit = (100 * 1024 * 1024) if big_vmem else (52 * 1024 * 1024)
    return tm, vmem_limit


def _plan_kernel2(n_nodes, tm, vmem_budget, hp, h2p, outp):
    """Fix tm per generation; shrink only the K tile if VMEM is tight."""
    tk = 512
    np_small = _round_up(max(n_nodes, tm), tm)
    if np_small <= tk:
        np_ = np_small
        tk = np_small                                # single K step
    else:
        np_ = _round_up(n_nodes, tk)                 # tk (512) is a multiple of tm

    def vmem_bytes(tk_):
        return (2 * tm * tk_ * 2                     # adjacency tile (bf16, 2 bufs)
                + 2 * tk_ * hp * 2                   # h K-tile        (bf16, 2 bufs)
                + 2 * tm * hp * 2                    # e_sum row tile  (bf16, 2 bufs)
                + tm * hp * 4                        # f32 accumulator scratch
                + 2 * (hp * h2p + h2p * outp + h2p + outp) * 4   # weights/biases
                + 2 * tm * outp * 4)                 # output tile

    while tk > tm and tk > LANE and vmem_bytes(tk) > vmem_budget:
        tk //= 2                                     # never shrink tm (MXU M-dim)
    return tk, np_


# --------------------------------------------------------------------------
# Wrapper
# --------------------------------------------------------------------------
def gnn_decoder_forward(x, edge_index, edge_attr, mask_node_indices, params):
    """GNNDecoder('gin') forward: PReLU -> enc_to_dec -> mask -> GINConv."""
    N, H = x.shape
    H2 = params["w1"].shape[0]                       # 2H
    out_dim = params["w2"].shape[0]

    Hp = _round_up(H, LANE)
    H2p = _round_up(H2, LANE)
    OUTp = _round_up(out_dim, LANE)

    tm, vmem_limit = _chip_config()
    tk, Np = _plan_kernel2(N, tm, int(0.8 * vmem_limit), Hp, H2p, OUTp)
    tm1 = min(512, Np)                               # kernel-1 row tile (mem-bound)
    grid_rows, grid_k, grid_rows1 = Np // tm, Np // tk, Np // tm1

    # ---- GINConv preamble (data-dependent gathers stay in the JAX wrapper) ----
    self_loops = jnp.stack([jnp.arange(N, dtype=edge_index.dtype)] * 2, axis=0)
    ei = jnp.concatenate([edge_index, self_loops], axis=1)            # [2, E+N]
    self_loop_attr = jnp.zeros((N, 2), dtype=edge_attr.dtype).at[:, 0].set(4)
    ea = jnp.concatenate([edge_attr, self_loop_attr], axis=0)         # [E+N, 2]
    edge_emb = (jnp.take(params["edge_emb1"], ea[:, 0], axis=0)
                + jnp.take(params["edge_emb2"], ea[:, 1], axis=0))    # [E+N, H]
    src, dst = ei[0], ei[1]

    # Dense integer-count adjacency (exact) + per-destination edge-emb sum.
    # bf16 counts are exact up to degree 256 (molecular graphs: degree <= ~6).
    # TODO(synk): for very large / high-degree sparse graphs, replace the dense
    # O(N^2) adjacency with a CSR + PrefetchScalarGridSpec gather/scatter kernel
    # (keep f32/int counts there); no int8 path on v7x (fp8/bf16 MXU only).
    adj = (jnp.zeros((Np, Np), jnp.float32).at[dst, src].add(1.0)
           ).astype(jnp.bfloat16)                                     # [Np, Np]
    e_sum = jnp.zeros((N, H), jnp.float32).at[dst].add(edge_emb)
    e_sum = jnp.pad(e_sum, ((0, Np - N), (0, Hp - H))).astype(jnp.bfloat16)

    # ---- lane-dense padding of inputs / weights ----
    x_p = jnp.pad(x.astype(jnp.float32), ((0, Np - N), (0, Hp - H)))
    mask = jnp.ones((N, 1), jnp.float32).at[mask_node_indices, 0].set(0.0)
    mask_p = jnp.pad(mask, ((0, Np - N), (0, 0)), constant_values=1.0)
    wenc_p = jnp.pad(params["w_enc"].T.astype(jnp.float32),
                     ((0, Hp - H), (0, Hp - H)))
    w1_p = jnp.pad(params["w1"].T.astype(jnp.float32),
                   ((0, Hp - H), (0, H2p - H2)))
    b1_p = jnp.pad(params["b1"].astype(jnp.float32).reshape(1, -1),
                   ((0, 0), (0, H2p - H2)))
    w2_p = jnp.pad(params["w2"].T.astype(jnp.float32),
                   ((0, H2p - H2), (0, OUTp - out_dim)))
    b2_p = jnp.pad(params["b2"].astype(jnp.float32).reshape(1, -1),
                   ((0, 0), (0, OUTp - out_dim)))
    a = params["prelu_a"].astype(jnp.float32).reshape(1)

    cparams1 = pltpu.CompilerParams(dimension_semantics=("parallel",),
                                    vmem_limit_bytes=vmem_limit)
    cparams2 = pltpu.CompilerParams(dimension_semantics=("parallel", "arbitrary"),
                                    vmem_limit_bytes=vmem_limit)

    # ---- kernel 1: row-tiled h = mask * (PReLU(x) @ Wenc) -> bf16 ----
    cost1 = pl.CostEstimate(
        flops=int(2 * Np * Hp * Hp + 4 * Np * Hp),
        transcendentals=0,
        bytes_accessed=int(Np * Hp * 4 + Hp * Hp * 4 + Np * 4 + Np * Hp * 2))
    h = pl.pallas_call(
        encode_kernel,
        out_shape=jax.ShapeDtypeStruct((Np, Hp), jnp.bfloat16),
        grid=(grid_rows1,),
        in_specs=[
            pl.BlockSpec(memory_space=pltpu.MemorySpace.SMEM),   # PReLU scalar
            pl.BlockSpec((tm1, Hp), lambda i: (i, 0)),           # x row tile
            pl.BlockSpec((Hp, Hp), lambda i: (0, 0)),            # Wenc (grid-invariant)
            pl.BlockSpec((tm1, 1), lambda i: (i, 0)),            # mask row tile
        ],
        out_specs=pl.BlockSpec((tm1, Hp), lambda i: (i, 0)),
        compiler_params=cparams1,
        cost_estimate=cost1,
    )(a, x_p, wenc_p, mask_p)

    # ---- kernel 2: K-tiled out = MLP(A @ h + e_sum) ----
    # Grid-invariant operands (h K-tiles only change with k; W1/b1/W2/b2 never
    # change) are small after K-tiling, so default double-buffering is cheap.
    cost2 = pl.CostEstimate(
        flops=int(2 * Np * Np * Hp + 2 * Np * Hp * H2p + 2 * Np * H2p * OUTp),
        transcendentals=0,
        bytes_accessed=int(Np * Np * 2 + 2 * Np * Hp * 2
                           + (Hp * H2p + H2p * OUTp + H2p + OUTp) * 4
                           + Np * OUTp * 4))
    out_p = pl.pallas_call(
        aggregate_mlp_kernel,
        out_shape=jax.ShapeDtypeStruct((Np, OUTp), jnp.float32),
        grid=(grid_rows, grid_k),
        in_specs=[
            pl.BlockSpec((tm, tk), lambda i, k: (i, k)),         # adjacency tile (bf16)
            pl.BlockSpec((tk, Hp), lambda i, k: (k, 0)),         # h K-tile (bf16)
            pl.BlockSpec((tm, Hp), lambda i, k: (i, 0)),         # e_sum row tile (bf16)
            pl.BlockSpec((Hp, H2p), lambda i, k: (0, 0)),        # W1
            pl.BlockSpec((1, H2p), lambda i, k: (0, 0)),         # b1
            pl.BlockSpec((H2p, OUTp), lambda i, k: (0, 0)),      # W2
            pl.BlockSpec((1, OUTp), lambda i, k: (0, 0)),        # b2
        ],
        out_specs=pl.BlockSpec((tm, OUTp), lambda i, k: (i, 0)),
        scratch_shapes=[pltpu.VMEM((tm, Hp), jnp.float32)],      # f32 accumulator
        compiler_params=cparams2,
        cost_estimate=cost2,
    )(adj, h, e_sum, w1_p, b1_p, w2_p, b2_p)

    return out_p[:N, :out_dim]


# --------------------------------------------------------------------------
# Params + plain-JAX reference (mirrors the PyTorch semantics, f32)
# --------------------------------------------------------------------------
def init_params(key, hidden_dim, out_dim):
    ks = jax.random.split(key, 7)
    scale = 0.1
    return {
        "prelu_a": jnp.array([0.25], dtype=jnp.float32),        # PReLU default
        "w_enc": scale * jax.random.normal(ks[0], (hidden_dim, hidden_dim), jnp.float32),
        "w1": scale * jax.random.normal(ks[1], (2 * hidden_dim, hidden_dim), jnp.float32),
        "b1": scale * jax.random.normal(ks[2], (2 * hidden_dim,), jnp.float32),
        "w2": scale * jax.random.normal(ks[3], (out_dim, 2 * hidden_dim), jnp.float32),
        "b2": scale * jax.random.normal(ks[4], (out_dim,), jnp.float32),
        "edge_emb1": scale * jax.random.normal(ks[5], (NUM_BOND_TYPE, hidden_dim), jnp.float32),
        "edge_emb2": scale * jax.random.normal(ks[6], (NUM_BOND_DIRECTION, hidden_dim), jnp.float32),
        # dec_token exists in __init__ but is unused in forward.
    }


def reference_forward(x, edge_index, edge_attr, mask_node_indices, params):
    N, H = x.shape
    a = params["prelu_a"][0]
    h = jnp.where(x > 0, x, a * x)
    h = h @ params["w_enc"].T
    h = h.at[mask_node_indices].set(0.0)

    self_loops = jnp.stack([jnp.arange(N, dtype=edge_index.dtype)] * 2, axis=0)
    ei = jnp.concatenate([edge_index, self_loops], axis=1)
    self_loop_attr = jnp.zeros((N, 2), dtype=edge_attr.dtype).at[:, 0].set(4)
    ea = jnp.concatenate([edge_attr, self_loop_attr], axis=0)
    edge_emb = (jnp.take(params["edge_emb1"], ea[:, 0], axis=0)
                + jnp.take(params["edge_emb2"], ea[:, 1], axis=0))
    msg = h[ei[0]] + edge_emb
    aggr = jnp.zeros((N, H), jnp.float32).at[ei[1]].add(msg)
    hid = jnp.maximum(aggr @ params["w1"].T + params["b1"], 0.0)
    return hid @ params["w2"].T + params["b2"]


if __name__ == "__main__":
    key = jax.random.PRNGKey(0)
    k_x, k_ei, k_ea, k_p = jax.random.split(key, 4)

    N, H, OUT, E = 16, 32, 32, 24
    x = jax.random.normal(k_x, (N, H), jnp.float32)
    edge_index = jax.random.randint(k_ei, (2, E), 0, N, dtype=jnp.int32)
    edge_attr = jnp.stack(
        [jax.random.randint(k_ea, (E,), 0, 4, dtype=jnp.int32),
         jax.random.randint(jax.random.fold_in(k_ea, 1), (E,), 0,
                            NUM_BOND_DIRECTION, dtype=jnp.int32)],
        axis=1)                                                   # [E, 2]
    mask_node_indices = jnp.array([1, 5, 7, 12], dtype=jnp.int32)

    params = init_params(k_p, H, OUT)

    out = gnn_decoder_forward(x, edge_index, edge_attr, mask_node_indices, params)
    out = jax.block_until_ready(out)

    ref = reference_forward(x, edge_index, edge_attr, mask_node_indices, params)
    assert out.shape == (N, OUT)
    # bf16 storage of h / A / e_sum introduces ~1e-3-level rounding vs the pure
    # f32 reference; tolerance set accordingly.
    assert jnp.allclose(out, ref, atol=2e-2, rtol=2e-2)

    print("KERNEL_OK")
</pallas_src>

<mosaic_0001>
module attributes {stable_mosaic.version = 11 : i64} {
  func.func @encode_kernel(%arg0: i32, %arg1: memref<1xf32, #tpu.memory_space<smem>>, %arg2: memref<256x128xf32, #tpu.memory_space<vmem>>, %arg3: memref<128x128xf32, #tpu.memory_space<vmem>>, %arg4: memref<256x1xf32, #tpu.memory_space<vmem>>, %arg5: memref<256x128xbf16, #tpu.memory_space<vmem>>) attributes {dimension_semantics = [#tpu.dimension_semantics<parallel>], iteration_bounds = array<i64: 1>, scalar_prefetch = 0 : i64, scratch_operands = 0 : i64, tpu.core_type = #tpu.core_type<tc>, window_params = [{transform_indices = @transform_0, window_bounds = array<i64: 1>}, {transform_indices = @transform_1, window_bounds = array<i64: 256, 128>}, {pipeline_mode = #tpu.pipeline_mode<synchronous>, transform_indices = @transform_2, window_bounds = array<i64: 128, 128>}, {transform_indices = @transform_3, window_bounds = array<i64: 256, 1>}, {transform_indices = @transform_4, window_bounds = array<i64: 256, 128>}]} {
    %c0 = arith.constant 0 : index
    %0 = memref.load %arg1[%c0] : memref<1xf32, #tpu.memory_space<smem>>
    %c0_0 = arith.constant 0 : index
    %c0_1 = arith.constant 0 : index
    %1 = vector.load %arg2[%c0_0, %c0_1] : memref<256x128xf32, #tpu.memory_space<vmem>>, vector<256x128xf32>
    %cst = arith.constant 0.000000e+00 : f32
    %2 = vector.broadcast %cst : f32 to vector<256x128xf32>
    %3 = arith.cmpf ogt, %1, %2 : vector<256x128xf32>
    %4 = vector.broadcast %0 : f32 to vector<256x128xf32>
    %5 = arith.mulf %4, %1 : vector<256x128xf32>
    %6 = arith.select %3, %1, %5 : vector<256x128xi1>, vector<256x128xf32>
    %c0_2 = arith.constant 0 : index
    %c0_3 = arith.constant 0 : index
    %7 = vector.load %arg3[%c0_2, %c0_3] : memref<128x128xf32, #tpu.memory_space<vmem>>, vector<128x128xf32>
    %cst_4 = arith.constant dense<0.000000e+00> : vector<256x128xf32>
    %8 = tpu.matmul %6, %7, %cst_4 {dimension_numbers = #tpu.dot_dimension_numbers<[1], [0], [0], [1], [0, 0, 1, 1], [], []>} : vector<256x128xf32>, vector<128x128xf32>, vector<256x128xf32> -> vector<256x128xf32>
    %c0_5 = arith.constant 0 : index
    %c0_6 = arith.constant 0 : index
    %9 = vector.load %arg4[%c0_5, %c0_6] : memref<256x1xf32, #tpu.memory_space<vmem>>, vector<256x1xf32>
    %cst_7 = arith.constant 0.000000e+00 : f32
    %10 = vector.broadcast %cst_7 : f32 to vector<256x1xf32>
    %11 = arith.cmpf ogt, %9, %10 : vector<256x1xf32>
    %cst_8 = arith.constant 0.000000e+00 : f32
    %12 = vector.shape_cast %11 : vector<256x1xi1> to vector<256x1xi1>
    %13 = vector.broadcast %12 : vector<256x1xi1> to vector<256x128xi1>
    %14 = vector.broadcast %cst_8 : f32 to vector<256x128xf32>
    %15 = arith.select %13, %8, %14 : vector<256x128xi1>, vector<256x128xf32>
    %16 = arith.truncf %15 : vector<256x128xf32> to vector<256x128xbf16>
    %c0_9 = arith.constant 0 : index
    %c0_10 = arith.constant 0 : index
    %17 = vector.load %arg5[%c0_9, %c0_10] : memref<256x128xbf16, #tpu.memory_space<vmem>>, vector<256x128xbf16>
    tpu.vector_store %arg5[%c0_9, %c0_10], %16 {strides = array<i32>} : memref<256x128xbf16, #tpu.memory_space<vmem>>, vector<256x128xbf16>,
    return
  }
  func.func @transform_0(%arg0: i32) -> i32 {
    %c0_i32 = arith.constant 0 : i32
    %c0_i32_0 = arith.constant 0 : i32
    return %c0_i32 : i32
  }
  func.func @transform_1(%arg0: i32) -> (i32, i32) {
    %c0_i32 = arith.constant 0 : i32
    %c0_i32_0 = arith.constant 0 : i32
    return %arg0, %c0_i32 : i32, i32
  }
  func.func @transform_2(%arg0: i32) -> (i32, i32) {
    %c0_i32 = arith.constant 0 : i32
    %c0_i32_0 = arith.constant 0 : i32
    %c0_i32_1 = arith.constant 0 : i32
    return %c0_i32, %c0_i32_0 : i32, i32
  }
  func.func @transform_3(%arg0: i32) -> (i32, i32) {
    %c0_i32 = arith.constant 0 : i32
    %c0_i32_0 = arith.constant 0 : i32
    return %arg0, %c0_i32 : i32, i32
  }
  func.func @transform_4(%arg0: i32) -> (i32, i32) {
    %c0_i32 = arith.constant 0 : i32
    %c0_i32_0 = arith.constant 0 : i32
    return %arg0, %c0_i32 : i32, i32
  }
}

</mosaic_0001>

<llo_original>
// kernel: tpu_custom_call.1
$region0: #{tpu_custom_call.1}
  #allocation0 [shape = 'u32[]', space=smem, size = 0x4, offset = 0x4, fixed_abs, tag = 'smem constant byte address 0x4 - core index']
  #allocation1 [shape = 'u32[72,128]{1,0:T(1,128)}', space=vmem, size = 0x9000, scoped, tag = 'internal scratch']
  #allocation2 [shape = 'f32[1]{0:T(128)S(6)}', space=smem, size = 0x200, scoped, tag = 'scoped memory for tpu_custom_call.1']
  %s0 = inlined_call_operand.<no memory space> [shape: f32[1], index: 0, kind: input, shape index: {}]
  %s1 = inlined_call_operand.vmem [shape: f32[256,128], index: 1, kind: input, shape index: {}]
  %s2 = inlined_call_operand.hbm [shape: f32[128,128], index: 2, kind: input, shape index: {}]
  %s3 = inlined_call_operand.vmem [shape: f32[256,1], index: 3, kind: input, shape index: {}]
  %s4 = inlined_call_operand.hbm [shape: bf16[256,128], index: 4, kind: output, shape index: {}]
  %s5 = sld [smem:[#allocation0]]
  $region30: #{tpu_custom_call.1} parent=0
    _
  %s7 = ssub.s32 1, %s5
  %s8 = scalar_select 0, %s7, %s5
  %9 = sst [smem:[#allocation2]] %s0
  $region1: #{tpu_custom_call.1} parent=0
    #allocation3 [shape = 'u8[65536]{0}', space=vmem, size = 0x10000, scoped, tag = 'input window, operand 2, single buffered']
    #allocation4 [shape = 's32[1]{0}', space=sflag, size = 0x4, scoped, tag = 'scoped memory for tpu_custom_call.1']
    #allocation5 [shape = 's32[1]{0}', space=sflag, size = 0x4, scoped, tag = 'scoped memory for tpu_custom_call.1']
    #allocation6 [shape = 'u8[65536]{0}', space=vmem, size = 0x10000, scoped, tag = 'output window, operand 0, single buffered']
    %10 = vsyncpa [#allocation4], 0
    %11 = vsyncpa [#allocation5], 0
    // Predicated region
    $region2: #{tpu_custom_call.1} parent=1 // pred_check
      _
    $region3: #{tpu_custom_call.1} parent=1 // pred_check_branch
      %13 = sbr.rel (0) target = $region5
    $region4: #{tpu_custom_call.1} parent=1 // pred_region
      _
    $region5: #{tpu_custom_call.1} parent=1 // pred_fallthru
      _
    // Predicated region
    $region6: #{tpu_custom_call.1} parent=1 // pred_check
      _
    $region7: #{tpu_custom_call.1} parent=1 // pred_check_branch
      %15 = sbr.rel (0) target = $region9
    $region8: #{tpu_custom_call.1} parent=1 // pred_region
      _
    $region9: #{tpu_custom_call.1} parent=1 // pred_fallthru
      _
    // Predicated region
    $region10: #{tpu_custom_call.1} parent=1 // pred_check
      _
    $region11: #{tpu_custom_call.1} parent=1 // pred_check_branch
      %17 = sbr.rel (0) target = $region13
    $region12: #{tpu_custom_call.1} parent=1 // pred_region
      %19 = vsyncadd [#allocation4], 0
      %s20 = sshll.u32 %s2, 4
      %s21 = int_to_ptr.hbm [resolvable:$true] %s20
      %s22 = sshll.u32 [#allocation3], 4
      %s23 = int_to_ptr.vmem [resolvable:$true] %s22
      %28 = dma.hbm_to_vmem [thread:$0]  %s21, 2048, %s23, [#allocation4], 128, 128, 8
    $region13: #{tpu_custom_call.1} parent=1 // pred_fallthru
      _
    // Predicated region
    $region14: #{tpu_custom_call.1} parent=1 // pred_check
      _
    $region15: #{tpu_custom_call.1} parent=1 // pred_check_branch
      %30 = sbr.rel (0) target = $region17
    $region16: #{tpu_custom_call.1} parent=1 // pred_region
      _
    $region17: #{tpu_custom_call.1} parent=1 // pred_fallthru
      _
    // Predicated region
    $region18: #{tpu_custom_call.1} parent=1 // pred_check
      _
    $region19: #{tpu_custom_call.1} parent=1 // pred_check_branch
      %32 = sbr.rel (0) target = $region21
    $region20: #{tpu_custom_call.1} parent=1 // pred_region
      %34 = dma.done [#allocation4], 2048
    $region21: #{tpu_custom_call.1} parent=1 // pred_fallthru
      _
    %s35 = sld [smem:[#allocation2]]
    %v36 = vld [vmem:[%s1] sm:$0xff]
    %v37 = vld [vmem:[%s1 + $0x8] sm:$0xff]
    %v38 = vld [vmem:[%s1 + $0x10] sm:$0xff]
    %v39 = vld [vmem:[%s1 + $0x18] sm:$0xff]
    %v40 = vld [vmem:[%s1 + $0x20] sm:$0xff]
    %v41 = vld [vmem:[%s1 + $0x28] sm:$0xff]
    %v42 = vld [vmem:[%s1 + $0x30] sm:$0xff]
    %v43 = vld [vmem:[%s1 + $0x38] sm:$0xff]
    %v44 = vld [vmem:[%s1 + $0x40] sm:$0xff]
    %v45 = vld [vmem:[%s1 + $0x48] sm:$0xff]
    %v46 = vld [vmem:[%s1 + $0x50] sm:$0xff]
    %v47 = vld [vmem:[%s1 + $0x58] sm:$0xff]
    %v48 = vld [vmem:[%s1 + $0x60] sm:$0xff]
    %v49 = vld [vmem:[%s1 + $0x68] sm:$0xff]
    %v50 = vld [vmem:[%s1 + $0x70] sm:$0xff]
    %v51 = vld [vmem:[%s1 + $0x78] sm:$0xff]
    %v52 = vld [vmem:[%s1 + $0x80] sm:$0xff]
    %v53 = vld [vmem:[%s1 + $0x88] sm:$0xff]
    %v54 = vld [vmem:[%s1 + $0x90] sm:$0xff]
    %v55 = vld [vmem:[%s1 + $0x98] sm:$0xff]
    %v56 = vld [vmem:[%s1 + $0xa0] sm:$0xff]
    %v57 = vld [vmem:[%s1 + $0xa8] sm:$0xff]
    %v58 = vld [vmem:[%s1 + $0xb0] sm:$0xff]
    %v59 = vld [vmem:[%s1 + $0xb8] sm:$0xff]
    %v60 = vld [vmem:[%s1 + $0xc0] sm:$0xff]
    %v61 = vld [vmem:[%s1 + $0xc8] sm:$0xff]
    %v62 = vld [vmem:[%s1 + $0xd0] sm:$0xff]
    %v63 = vld [vmem:[%s1 + $0xd8] sm:$0xff]
    %v64 = vld [vmem:[%s1 + $0xe0] sm:$0xff]
    %v65 = vld [vmem:[%s1 + $0xe8] sm:$0xff]
    %v66 = vld [vmem:[%s1 + $0xf0] sm:$0xff]
    %v67 = vld [vmem:[%s1 + $0xf8] sm:$0xff]
    %vm68 = vcmp.gt.f32.partialorder %v36, 0.0
    %vm69 = vcmp.gt.f32.partialorder %v37, 0.0
    %vm70 = vcmp.gt.f32.partialorder %v38, 0.0
    %vm71 = vcmp.gt.f32.partialorder %v39, 0.0
    %vm72 = vcmp.gt.f32.partialorder %v40, 0.0
    %vm73 = vcmp.gt.f32.partialorder %v41, 0.0
    %vm74 = vcmp.gt.f32.partialorder %v42, 0.0
    %vm75 = vcmp.gt.f32.partialorder %v43, 0.0
    %vm76 = vcmp.gt.f32.partialorder %v44, 0.0
    %vm77 = vcmp.gt.f32.partialorder %v45, 0.0
    %vm78 = vcmp.gt.f32.partialorder %v46, 0.0
    %vm79 = vcmp.gt.f32.partialorder %v47, 0.0
    %vm80 = vcmp.gt.f32.partialorder %v48, 0.0
    %vm81 = vcmp.gt.f32.partialorder %v49, 0.0
    %vm82 = vcmp.gt.f32.partialorder %v50, 0.0
    %vm83 = vcmp.gt.f32.partialorder %v51, 0.0
    %vm84 = vcmp.gt.f32.partialorder %v52, 0.0
    %vm85 = vcmp.gt.f32.partialorder %v53, 0.0
    %vm86 = vcmp.gt.f32.partialorder %v54, 0.0
    %vm87 = vcmp.gt.f32.partialorder %v55, 0.0
    %vm88 = vcmp.gt.f32.partialorder %v56, 0.0
    %vm89 = vcmp.gt.f32.partialorder %v57, 0.0
    %vm90 = vcmp.gt.f32.partialorder %v58, 0.0
    %vm91 = vcmp.gt.f32.partialorder %v59, 0.0
    %vm92 = vcmp.gt.f32.partialorder %v60, 0.0
    %vm93 = vcmp.gt.f32.partialorder %v61, 0.0
    %vm94 = vcmp.gt.f32.partialorder %v62, 0.0
    %vm95 = vcmp.gt.f32.partialorder %v63, 0.0
    %vm96 = vcmp.gt.f32.partialorder %v64, 0.0
    %vm97 = vcmp.gt.f32.partialorder %v65, 0.0
    %vm98 = vcmp.gt.f32.partialorder %v66, 0.0
    %vm99 = vcmp.gt.f32.partialorder %v67, 0.0
    %v100 = vstv %s35
    %v101 = vmul.f32 %v100, %v36
    %v102 = vmul.f32 %v100, %v37
    %v103 = vmul.f32 %v100, %v38
    %v104 = vmul.f32 %v100, %v39
    %v105 = vmul.f32 %v100, %v40
    %v106 = vmul.f32 %v100, %v41
    %v107 = vmul.f32 %v100, %v42
    %v108 = vmul.f32 %v100, %v43
    %v109 = vmul.f32 %v100, %v44
    %v110 = vmul.f32 %v100, %v45
    %v111 = vmul.f32 %v100, %v46
    %v112 = vmul.f32 %v100, %v47
    %v113 = vmul.f32 %v100, %v48
    %v114 = vmul.f32 %v100, %v49
    %v115 = vmul.f32 %v100, %v50
    %v116 = vmul.f32 %v100, %v51
    %v117 = vmul.f32 %v100, %v52
    %v118 = vmul.f32 %v100, %v53
    %v119 = vmul.f32 %v100, %v54
    %v120 = vmul.f32 %v100, %v55
    %v121 = vmul.f32 %v100, %v56
    %v122 = vmul.f32 %v100, %v57
    %v123 = vmul.f32 %v100, %v58
    %v124 = vmul.f32 %v100, %v59
    %v125 = vmul.f32 %v100, %v60
    %v126 = vmul.f32 %v100, %v61
    %v127 = vmul.f32 %v100, %v62
    %v128 = vmul.f32 %v100, %v63
    %v129 = vmul.f32 %v100, %v64
    %v130 = vmul.f32 %v100, %v65
    %v131 = vmul.f32 %v100, %v66
    %v132 = vmul.f32 %v100, %v67
    %v133 = vsel %vm68, %v36, %v101
    %v134 = vsel %vm69, %v37, %v102
    %v135 = vsel %vm70, %v38, %v103
    %v136 = vsel %vm71, %v39, %v104
    %v137 = vsel %vm72, %v40, %v105
    %v138 = vsel %vm73, %v41, %v106
    %v139 = vsel %vm74, %v42, %v107
    %v140 = vsel %vm75, %v43, %v108
    %v141 = vsel %vm76, %v44, %v109
    %v142 = vsel %vm77, %v45, %v110
    %v143 = vsel %vm78, %v46, %v111
    %v144 = vsel %vm79, %v47, %v112
    %v145 = vsel %vm80, %v48, %v113
    %v146 = vsel %vm81, %v49, %v114
    %v147 = vsel %vm82, %v50, %v115
    %v148 = vsel %vm83, %v51, %v116
    %v149 = vsel %vm84, %v52, %v117
    %v150 = vsel %vm85, %v53, %v118
    %v151 = vsel %vm86, %v54, %v119
    %v152 = vsel %vm87, %v55, %v120
    %v153 = vsel %vm88, %v56, %v121
    %v154 = vsel %vm89, %v57, %v122
    %v155 = vsel %vm90, %v58, %v123
    %v156 = vsel %vm91, %v59, %v124
    %v157 = vsel %vm92, %v60, %v125
    %v158 = vsel %vm93, %v61, %v126
    %v159 = vsel %vm94, %v62, %v127
    %v160 = vsel %vm95, %v63, %v128
    %v161 = vsel %vm96, %v64, %v129
    %v162 = vsel %vm97, %v65, %v130
    %v163 = vsel %vm98, %v66, %v131
    %v164 = vsel %vm99, %v67, %v132
    %v165 = vld [vmem:[#allocation3] sm:$0xff]
    %v166 = vld [vmem:[#allocation3 + $0x8] sm:$0xff]
    %v167 = vld [vmem:[#allocation3 + $0x10] sm:$0xff]
    %v168 = vld [vmem:[#allocation3 + $0x18] sm:$0xff]
    %v169 = vld [vmem:[#allocation3 + $0x20] sm:$0xff]
    %v170 = vld [vmem:[#allocation3 + $0x28] sm:$0xff]
    %v171 = vld [vmem:[#allocation3 + $0x30] sm:$0xff]
    %v172 = vld [vmem:[#allocation3 + $0x38] sm:$0xff]
    %v173 = vld [vmem:[#allocation3 + $0x40] sm:$0xff]
    %v174 = vld [vmem:[#allocation3 + $0x48] sm:$0xff]
    %v175 = vld [vmem:[#allocation3 + $0x50] sm:$0xff]
    %v176 = vld [vmem:[#allocation3 + $0x58] sm:$0xff]
    %v177 = vld [vmem:[#allocation3 + $0x60] sm:$0xff]
    %v178 = vld [vmem:[#allocation3 + $0x68] sm:$0xff]
    %v179 = vld [vmem:[#allocation3 + $0x70] sm:$0xff]
    %v180 = vld [vmem:[#allocation3 + $0x78] sm:$0xff]
    %181 = vmatpush.msra.mxu0 %v180
    %182 = vmatpush.msra.mxu0 %v179
    %183 = vmatpush.msra.mxu0 %v178
    %184 = vmatpush.msra.mxu0 %v177
    %185 = vmatpush.msra.mxu0 %v176
    %186 = vmatpush.msra.mxu0 %v175
    %187 = vmatpush.msra.mxu0 %v174
    %188 = vmatpush.msra.mxu0 %v173
    %189 = vmatpush.msra.mxu0 %v172
    %190 = vmatpush.msra.mxu0 %v171
    %191 = vmatpush.msra.mxu0 %v170
    %192 = vmatpush.msra.mxu0 %v169
    %193 = vmatpush.msra.mxu0 %v168
    %194 = vmatpush.msra.mxu0 %v167
    %195 = vmatpush.msra.mxu0 %v166
    %196 = vmatpush.msra.mxu0 %v165
    %197 = vmatmul.f32.gmra.mxu0 %v133
    %v198 = vpop.f32.mrf.mxu0
    %v199 = vadd.f32 0.0, %v198
    %200 = vmatmul.f32.gmra.mxu0 %v134
    %v201 = vpop.f32.mrf.mxu0
    %v202 = vadd.f32 0.0, %v201
    %203 = vmatmul.f32.gmra.mxu0 %v135
    %v204 = vpop.f32.mrf.mxu0
    %v205 = vadd.f32 0.0, %v204
    %206 = vmatmul.f32.gmra.mxu0 %v136
    %v207 = vpop.f32.mrf.mxu0
    %v208 = vadd.f32 0.0, %v207
    %209 = vmatmul.f32.gmra.mxu0 %v137
    %v210 = vpop.f32.mrf.mxu0
    %v211 = vadd.f32 0.0, %v210
    %212 = vmatmul.f32.gmra.mxu0 %v138
    %v213 = vpop.f32.mrf.mxu0
    %v214 = vadd.f32 0.0, %v213
    %215 = vmatmul.f32.gmra.mxu0 %v139
    %v216 = vpop.f32.mrf.mxu0
    %v217 = vadd.f32 0.0, %v216
    %218 = vmatmul.f32.gmra.mxu0 %v140
    %v219 = vpop.f32.mrf.mxu0
    %v220 = vadd.f32 0.0, %v219
    %221 = vmatmul.f32.gmra.mxu0 %v141
    %v222 = vpop.f32.mrf.mxu0
    %v223 = vadd.f32 0.0, %v222
    %224 = vmatmul.f32.gmra.mxu0 %v142
    %v225 = vpop.f32.mrf.mxu0
    %v226 = vadd.f32 0.0, %v225
    %227 = vmatmul.f32.gmra.mxu0 %v143
    %v228 = vpop.f32.mrf.mxu0
    %v229 = vadd.f32 0.0, %v228
    %230 = vmatmul.f32.gmra.mxu0 %v144
    %v231 = vpop.f32.mrf.mxu0
    %v232 = vadd.f32 0.0, %v231
    %233 = vmatmul.f32.gmra.mxu0 %v145
    %v234 = vpop.f32.mrf.mxu0
    %v235 = vadd.f32 0.0, %v234
    %236 = vmatmul.f32.gmra.mxu0 %v146
    %v237 = vpop.f32.mrf.mxu0
    %v238 = vadd.f32 0.0, %v237
    %239 = vmatmul.f32.gmra.mxu0 %v147
    %v240 = vpop.f32.mrf.mxu0
    %v241 = vadd.f32 0.0, %v240
    %242 = vmatmul.f32.gmra.mxu0 %v148
    %v243 = vpop.f32.mrf.mxu0
    %v244 = vadd.f32 0.0, %v243
    %245 = vmatmul.f32.gmra.mxu0 %v149
    %v246 = vpop.f32.mrf.mxu0
    %v247 = vadd.f32 0.0, %v246
    %248 = vmatmul.f32.gmra.mxu0 %v150
    %v249 = vpop.f32.mrf.mxu0
    %v250 = vadd.f32 0.0, %v249
    %251 = vmatmul.f32.gmra.mxu0 %v151
    %v252 = vpop.f32.mrf.mxu0
    %v253 = vadd.f32 0.0, %v252
    %254 = vmatmul.f32.gmra.mxu0 %v152
    %v255 = vpop.f32.mrf.mxu0
    %v256 = vadd.f32 0.0, %v255
    %257 = vmatmul.f32.gmra.mxu0 %v153
    %v258 = vpop.f32.mrf.mxu0
    %v259 = vadd.f32 0.0, %v258
    %260 = vmatmul.f32.gmra.mxu0 %v154
    %v261 = vpop.f32.mrf.mxu0
    %v262 = vadd.f32 0.0, %v261
    %263 = vmatmul.f32.gmra.mxu0 %v155
    %v264 = vpop.f32.mrf.mxu0
    %v265 = vadd.f32 0.0, %v264
    %266 = vmatmul.f32.gmra.mxu0 %v156
    %v267 = vpop.f32.mrf.mxu0
    %v268 = vadd.f32 0.0, %v267
    %269 = vmatmul.f32.gmra.mxu0 %v157
    %v270 = vpop.f32.mrf.mxu0
    %v271 = vadd.f32 0.0, %v270
    %272 = vmatmul.f32.gmra.mxu0 %v158
    %v273 = vpop.f32.mrf.mxu0
    %v274 = vadd.f32 0.0, %v273
    %275 = vmatmul.f32.gmra.mxu0 %v159
    %v276 = vpop.f32.mrf.mxu0
    %v277 = vadd.f32 0.0, %v276
    %278 = vmatmul.f32.gmra.mxu0 %v160
    %v279 = vpop.f32.mrf.mxu0
    %v280 = vadd.f32 0.0, %v279
    %281 = vmatmul.f32.gmra.mxu0 %v161
    %v282 = vpop.f32.mrf.mxu0
    %v283 = vadd.f32 0.0, %v282
    %284 = vmatmul.f32.gmra.mxu0 %v162
    %v285 = vpop.f32.mrf.mxu0
    %v286 = vadd.f32 0.0, %v285
    %287 = vmatmul.f32.gmra.mxu0 %v163
    %v288 = vpop.f32.mrf.mxu0
    %v289 = vadd.f32 0.0, %v288
    %290 = vmatmul.f32.gmra.mxu0 %v164
    %v291 = vpop.f32.mrf.mxu0
    %v292 = vadd.f32 0.0, %v291
    %293 = vdwg.mxu0
    %v294 = vld [vmem:[%s3] sm:$0xff]
    %v295 = vld [vmem:[%s3 + $0x8] sm:$0xff]
    %v296 = vld [vmem:[%s3 + $0x10] sm:$0xff]
    %v297 = vld [vmem:[%s3 + $0x18] sm:$0xff]
    %v298 = vld [vmem:[%s3 + $0x20] sm:$0xff]
    %v299 = vld [vmem:[%s3 + $0x28] sm:$0xff]
    %v300 = vld [vmem:[%s3 + $0x30] sm:$0xff]
    %v301 = vld [vmem:[%s3 + $0x38] sm:$0xff]
    %v302 = vld [vmem:[%s3 + $0x40] sm:$0xff]
    %v303 = vld [vmem:[%s3 + $0x48] sm:$0xff]
    %v304 = vld [vmem:[%s3 + $0x50] sm:$0xff]
    %v305 = vld [vmem:[%s3 + $0x58] sm:$0xff]
    %v306 = vld [vmem:[%s3 + $0x60] sm:$0xff]
    %v307 = vld [vmem:[%s3 + $0x68] sm:$0xff]
    %v308 = vld [vmem:[%s3 + $0x70] sm:$0xff]
    %v309 = vld [vmem:[%s3 + $0x78] sm:$0xff]
    %v310 = vld [vmem:[%s3 + $0x80] sm:$0xff]
    %v311 = vld [vmem:[%s3 + $0x88] sm:$0xff]
    %v312 = vld [vmem:[%s3 + $0x90] sm:$0xff]
    %v313 = vld [vmem:[%s3 + $0x98] sm:$0xff]
    %v314 = vld [vmem:[%s3 + $0xa0] sm:$0xff]
    %v315 = vld [vmem:[%s3 + $0xa8] sm:$0xff]
    %v316 = vld [vmem:[%s3 + $0xb0] sm:$0xff]
    %v317 = vld [vmem:[%s3 + $0xb8] sm:$0xff]
    %v318 = vld [vmem:[%s3 + $0xc0] sm:$0xff]
    %v319 = vld [vmem:[%s3 + $0xc8] sm:$0xff]
    %v320 = vld [vmem:[%s3 + $0xd0] sm:$0xff]
    %v321 = vld [vmem:[%s3 + $0xd8] sm:$0xff]
    %v322 = vld [vmem:[%s3 + $0xe0] sm:$0xff]
    %v323 = vld [vmem:[%s3 + $0xe8] sm:$0xff]
    %v324 = vld [vmem:[%s3 + $0xf0] sm:$0xff]
    %v325 = vld [vmem:[%s3 + $0xf8] sm:$0xff]
    %vm326 = vcmp.gt.f32.partialorder %v294, 0.0
    %vm327 = vcmp.gt.f32.partialorder %v295, 0.0
    %vm328 = vcmp.gt.f32.partialorder %v296, 0.0
    %vm329 = vcmp.gt.f32.partialorder %v297, 0.0
    %vm330 = vcmp.gt.f32.partialorder %v298, 0.0
    %vm331 = vcmp.gt.f32.partialorder %v299, 0.0
    %vm332 = vcmp.gt.f32.partialorder %v300, 0.0
    %vm333 = vcmp.gt.f32.partialorder %v301, 0.0
    %vm334 = vcmp.gt.f32.partialorder %v302, 0.0
    %vm335 = vcmp.gt.f32.partialorder %v303, 0.0
    %vm336 = vcmp.gt.f32.partialorder %v304, 0.0
    %vm337 = vcmp.gt.f32.partialorder %v305, 0.0
    %vm338 = vcmp.gt.f32.partialorder %v306, 0.0
    %vm339 = vcmp.gt.f32.partialorder %v307, 0.0
    %vm340 = vcmp.gt.f32.partialorder %v308, 0.0
    %vm341 = vcmp.gt.f32.partialorder %v309, 0.0
    %vm342 = vcmp.gt.f32.partialorder %v310, 0.0
    %vm343 = vcmp.gt.f32.partialorder %v311, 0.0
    %vm344 = vcmp.gt.f32.partialorder %v312, 0.0
    %vm345 = vcmp.gt.f32.partialorder %v313, 0.0
    %vm346 = vcmp.gt.f32.partialorder %v314, 0.0
    %vm347 = vcmp.gt.f32.partialorder %v315, 0.0
    %vm348 = vcmp.gt.f32.partialorder %v316, 0.0
    %vm349 = vcmp.gt.f32.partialorder %v317, 0.0
    %vm350 = vcmp.gt.f32.partialorder %v318, 0.0
    %vm351 = vcmp.gt.f32.partialorder %v319, 0.0
    %vm352 = vcmp.gt.f32.partialorder %v320, 0.0
    %vm353 = vcmp.gt.f32.partialorder %v321, 0.0
    %vm354 = vcmp.gt.f32.partialorder %v322, 0.0
    %vm355 = vcmp.gt.f32.partialorder %v323, 0.0
    %vm356 = vcmp.gt.f32.partialorder %v324, 0.0
    %vm357 = vcmp.gt.f32.partialorder %v325, 0.0
    %v358 = vsel %vm326, 1, 0
    %v359 = vsel %vm327, 1, 0
    %v360 = vsel %vm328, 1, 0
    %v361 = vsel %vm329, 1, 0
    %v362 = vsel %vm330, 1, 0
    %v363 = vsel %vm331, 1, 0
    %v364 = vsel %vm332, 1, 0
    %v365 = vsel %vm333, 1, 0
    %v366 = vsel %vm334, 1, 0
    %v367 = vsel %vm335, 1, 0
    %v368 = vsel %vm336, 1, 0
    %v369 = vsel %vm337, 1, 0
    %v370 = vsel %vm338, 1, 0
    %v371 = vsel %vm339, 1, 0
    %v372 = vsel %vm340, 1, 0
    %v373 = vsel %vm341, 1, 0
    %v374 = vsel %vm342, 1, 0
    %v375 = vsel %vm343, 1, 0
    %v376 = vsel %vm344, 1, 0
    %v377 = vsel %vm345, 1, 0
    %v378 = vsel %vm346, 1, 0
    %v379 = vsel %vm347, 1, 0
    %v380 = vsel %vm348, 1, 0
    %v381 = vsel %vm349, 1, 0
    %v382 = vsel %vm350, 1, 0
    %v383 = vsel %vm351, 1, 0
    %v384 = vsel %vm352, 1, 0
    %v385 = vsel %vm353, 1, 0
    %v386 = vsel %vm354, 1, 0
    %v387 = vsel %vm355, 1, 0
    %v388 = vsel %vm356, 1, 0
    %v389 = vsel %vm357, 1, 0
    %390 = vset.pattern.permute.xlu0 0
    %391 = vperm.xlu0 %390, %v358
    %v392 = vpop.permute.xlu0 %391
    %393 = vset.pattern.permute.xlu0 0
    %394 = vperm.xlu0 %393, %v359
    %v395 = vpop.permute.xlu0 %394
    %396 = vset.pattern.permute.xlu0 0
    %397 = vperm.xlu0 %396, %v360
    %v398 = vpop.permute.xlu0 %397
    %399 = vset.pattern.permute.xlu0 0
    %400 = vperm.xlu0 %399, %v361
    %v401 = vpop.permute.xlu0 %400
    %402 = vset.pattern.permute.xlu0 0
    %403 = vperm.xlu0 %402, %v362
    %v404 = vpop.permute.xlu0 %403
    %405 = vset.pattern.permute.xlu0 0
    %406 = vperm.xlu0 %405, %v363
    %v407 = vpop.permute.xlu0 %406
    %408 = vset.pattern.permute.xlu0 0
    %409 = vperm.xlu0 %408, %v364
    %v410 = vpop.permute.xlu0 %409
    %411 = vset.pattern.permute.xlu0 0
    %412 = vperm.xlu0 %411, %v365
    %v413 = vpop.permute.xlu0 %412
    %414 = vset.pattern.permute.xlu0 0
    %415 = vperm.xlu0 %414, %v366
    %v416 = vpop.permute.xlu0 %415
    %417 = vset.pattern.permute.xlu0 0
    %418 = vperm.xlu0 %417, %v367
    %v419 = vpop.permute.xlu0 %418
    %420 = vset.pattern.permute.xlu0 0
    %421 = vperm.xlu0 %420, %v368
    %v422 = vpop.permute.xlu0 %421
    %423 = vset.pattern.permute.xlu0 0
    %424 = vperm.xlu0 %423, %v369
    %v425 = vpop.permute.xlu0 %424
    %426 = vset.pattern.permute.xlu0 0
    %427 = vperm.xlu0 %426, %v370
    %v428 = vpop.permute.xlu0 %427
    %429 = vset.pattern.permute.xlu0 0
    %430 = vperm.xlu0 %429, %v371
    %v431 = vpop.permute.xlu0 %430
    %432 = vset.pattern.permute.xlu0 0
    %433 = vperm.xlu0 %432, %v372
    %v434 = vpop.permute.xlu0 %433
    %435 = vset.pattern.permute.xlu0 0
    %436 = vperm.xlu0 %435, %v373
    %v437 = vpop.permute.xlu0 %436
    %438 = vset.pattern.permute.xlu0 0
    %439 = vperm.xlu0 %438, %v374
    %v440 = vpop.permute.xlu0 %439
    %441 = vset.pattern.permute.xlu0 0
    %442 = vperm.xlu0 %441, %v375
    %v443 = vpop.permute.xlu0 %442
    %444 = vset.pattern.permute.xlu0 0
    %445 = vperm.xlu0 %444, %v376
    %v446 = vpop.permute.xlu0 %445
    %447 = vset.pattern.permute.xlu0 0
    %448 = vperm.xlu0 %447, %v377
    %v449 = vpop.permute.xlu0 %448
    %450 = vset.pattern.permute.xlu0 0
    %451 = vperm.xlu0 %450, %v378
    %v452 = vpop.permute.xlu0 %451
    %453 = vset.pattern.permute.xlu0 0
    %454 = vperm.xlu0 %453, %v379
    %v455 = vpop.permute.xlu0 %454
    %456 = vset.pattern.permute.xlu0 0
    %457 = vperm.xlu0 %456, %v380
    %v458 = vpop.permute.xlu0 %457
    %459 = vset.pattern.permute.xlu0 0
    %460 = vperm.xlu0 %459, %v381
    %v461 = vpop.permute.xlu0 %460
    %462 = vset.pattern.permute.xlu0 0
    %463 = vperm.xlu0 %462, %v382
    %v464 = vpop.permute.xlu0 %463
    %465 = vset.pattern.permute.xlu0 0
    %466 = vperm.xlu0 %465, %v383
    %v467 = vpop.permute.xlu0 %466
    %468 = vset.pattern.permute.xlu0 0
    %469 = vperm.xlu0 %468, %v384
    %v470 = vpop.permute.xlu0 %469
    %471 = vset.pattern.permute.xlu0 0
    %472 = vperm.xlu0 %471, %v385
    %v473 = vpop.permute.xlu0 %472
    %474 = vset.pattern.permute.xlu0 0
    %475 = vperm.xlu0 %474, %v386
    %v476 = vpop.permute.xlu0 %475
    %477 = vset.pattern.permute.xlu0 0
    %478 = vperm.xlu0 %477, %v387
    %v479 = vpop.permute.xlu0 %478
    %480 = vset.pattern.permute.xlu0 0
    %481 = vperm.xlu0 %480, %v388
    %v482 = vpop.permute.xlu0 %481
    %483 = vset.pattern.permute.xlu0 0
    %484 = vperm.xlu0 %483, %v389
    %v485 = vpop.permute.xlu0 %484
    %vm486 = vcmp.eq.s32.totalorder %v392, 1
    %vm487 = vcmp.eq.s32.totalorder %v395, 1
    %vm488 = vcmp.eq.s32.totalorder %v398, 1
    %vm489 = vcmp.eq.s32.totalorder %v401, 1
    %vm490 = vcmp.eq.s32.totalorder %v404, 1
    %vm491 = vcmp.eq.s32.totalorder %v407, 1
    %vm492 = vcmp.eq.s32.totalorder %v410, 1
    %vm493 = vcmp.eq.s32.totalorder %v413, 1
    %vm494 = vcmp.eq.s32.totalorder %v416, 1
    %vm495 = vcmp.eq.s32.totalorder %v419, 1
    %vm496 = vcmp.eq.s32.totalorder %v422, 1
    %vm497 = vcmp.eq.s32.totalorder %v425, 1
    %vm498 = vcmp.eq.s32.totalorder %v428, 1
    %vm499 = vcmp.eq.s32.totalorder %v431, 1
    %vm500 = vcmp.eq.s32.totalorder %v434, 1
    %vm501 = vcmp.eq.s32.totalorder %v437, 1
    %vm502 = vcmp.eq.s32.totalorder %v440, 1
    %vm503 = vcmp.eq.s32.totalorder %v443, 1
    %vm504 = vcmp.eq.s32.totalorder %v446, 1
    %vm505 = vcmp.eq.s32.totalorder %v449, 1
    %vm506 = vcmp.eq.s32.totalorder %v452, 1
    %vm507 = vcmp.eq.s32.totalorder %v455, 1
    %vm508 = vcmp.eq.s32.totalorder %v458, 1
    %vm509 = vcmp.eq.s32.totalorder %v461, 1
    %vm510 = vcmp.eq.s32.totalorder %v464, 1
    %vm511 = vcmp.eq.s32.totalorder %v467, 1
    %vm512 = vcmp.eq.s32.totalorder %v470, 1
    %vm513 = vcmp.eq.s32.totalorder %v473, 1
    %vm514 = vcmp.eq.s32.totalorder %v476, 1
    %vm515 = vcmp.eq.s32.totalorder %v479, 1
    %vm516 = vcmp.eq.s32.totalorder %v482, 1
    %vm517 = vcmp.eq.s32.totalorder %v485, 1
    %v518 = vsel %vm486, %v199, 0.0
    %v519 = vsel %vm487, %v202, 0.0
    %v520 = vsel %vm488, %v205, 0.0
    %v521 = vsel %vm489, %v208, 0.0
    %v522 = vsel %vm490, %v211, 0.0
    %v523 = vsel %vm491, %v214, 0.0
    %v524 = vsel %vm492, %v217, 0.0
    %v525 = vsel %vm493, %v220, 0.0
    %v526 = vsel %vm494, %v223, 0.0
    %v527 = vsel %vm495, %v226, 0.0
    %v528 = vsel %vm496, %v229, 0.0
    %v529 = vsel %vm497, %v232, 0.0
    %v530 = vsel %vm498, %v235, 0.0
    %v531 = vsel %vm499, %v238, 0.0
    %v532 = vsel %vm500, %v241, 0.0
    %v533 = vsel %vm501, %v244, 0.0
    %v534 = vsel %vm502, %v247, 0.0
    %v535 = vsel %vm503, %v250, 0.0
    %v536 = vsel %vm504, %v253, 0.0
    %v537 = vsel %vm505, %v256, 0.0
    %v538 = vsel %vm506, %v259, 0.0
    %v539 = vsel %vm507, %v262, 0.0
    %v540 = vsel %vm508, %v265, 0.0
    %v541 = vsel %vm509, %v268, 0.0
    %v542 = vsel %vm510, %v271, 0.0
    %v543 = vsel %vm511, %v274, 0.0
    %v544 = vsel %vm512, %v277, 0.0
    %v545 = vsel %vm513, %v280, 0.0
    %v546 = vsel %vm514, %v283, 0.0
    %v547 = vsel %vm515, %v286, 0.0
    %v548 = vsel %vm516, %v289, 0.0
    %v549 = vsel %vm517, %v292, 0.0
    %v550 = vpack.c.bf16 %v518, %v518
    %v551 = vpack.c.bf16 %v519, %v519
    %v552 = vpack.c.bf16 %v520, %v520
    %v553 = vpack.c.bf16 %v521, %v521
    %v554 = vpack.c.bf16 %v522, %v522
    %v555 = vpack.c.bf16 %v523, %v523
    %v556 = vpack.c.bf16 %v524, %v524
    %v557 = vpack.c.bf16 %v525, %v525
    %v558 = vpack.c.bf16 %v526, %v526
    %v559 = vpack.c.bf16 %v527, %v527
    %v560 = vpack.c.bf16 %v528, %v528
    %v561 = vpack.c.bf16 %v529, %v529
    %v562 = vpack.c.bf16 %v530, %v530
    %v563 = vpack.c.bf16 %v531, %v531
    %v564 = vpack.c.bf16 %v532, %v532
    %v565 = vpack.c.bf16 %v533, %v533
    %v566 = vpack.c.bf16 %v534, %v534
    %v567 = vpack.c.bf16 %v535, %v535
    %v568 = vpack.c.bf16 %v536, %v536
    %v569 = vpack.c.bf16 %v537, %v537
    %v570 = vpack.c.bf16 %v538, %v538
    %v571 = vpack.c.bf16 %v539, %v539
    %v572 = vpack.c.bf16 %v540, %v540
    %v573 = vpack.c.bf16 %v541, %v541
    %v574 = vpack.c.bf16 %v542, %v542
    %v575 = vpack.c.bf16 %v543, %v543
    %v576 = vpack.c.bf16 %v544, %v544
    %v577 = vpack.c.bf16 %v545, %v545
    %v578 = vpack.c.bf16 %v546, %v546
    %v579 = vpack.c.bf16 %v547, %v547
    %v580 = vpack.c.bf16 %v548, %v548
    %v581 = vpack.c.bf16 %v549, %v549
    %582 = vst [vmem:[#allocation6] sm:$0xf] %v550
    %583 = vst [vmem:[#allocation6 + $0x4] sm:$0xf] %v551
    %584 = vst [vmem:[#allocation6 + $0x8] sm:$0xf] %v552
    %585 = vst [vmem:[#allocation6 + $0xc] sm:$0xf] %v553
    %586 = vst [vmem:[#allocation6 + $0x10] sm:$0xf] %v554
    %587 = vst [vmem:[#allocation6 + $0x14] sm:$0xf] %v555
    %588 = vst [vmem:[#allocation6 + $0x18] sm:$0xf] %v556
    %589 = vst [vmem:[#allocation6 + $0x1c] sm:$0xf] %v557
    %590 = vst [vmem:[#allocation6 + $0x20] sm:$0xf] %v558
    %591 = vst [vmem:[#allocation6 + $0x24] sm:$0xf] %v559
    %592 = vst [vmem:[#allocation6 + $0x28] sm:$0xf] %v560
    %593 = vst [vmem:[#allocation6 + $0x2c] sm:$0xf] %v561
    %594 = vst [vmem:[#allocation6 + $0x30] sm:$0xf] %v562
    %595 = vst [vmem:[#allocation6 + $0x34] sm:$0xf] %v563
    %596 = vst [vmem:[#allocation6 + $0x38] sm:$0xf] %v564
    %597 = vst [vmem:[#allocation6 + $0x3c] sm:$0xf] %v565
    %598 = vst [vmem:[#allocation6 + $0x40] sm:$0xf] %v566
    %599 = vst [vmem:[#allocation6 + $0x44] sm:$0xf] %v567
    %600 = vst [vmem:[#allocation6 + $0x48] sm:$0xf] %v568
    %601 = vst [vmem:[#allocation6 + $0x4c] sm:$0xf] %v569
    %602 = vst [vmem:[#allocation6 + $0x50] sm:$0xf] %v570
    %603 = vst [vmem:[#allocation6 + $0x54] sm:$0xf] %v571
    %604 = vst [vmem:[#allocation6 + $0x58] sm:$0xf] %v572
    %605 = vst [vmem:[#allocation6 + $0x5c] sm:$0xf] %v573
    %606 = vst [vmem:[#allocation6 + $0x60] sm:$0xf] %v574
    %607 = vst [vmem:[#allocation6 + $0x64] sm:$0xf] %v575
    %608 = vst [vmem:[#allocation6 + $0x68] sm:$0xf] %v576
    %609 = vst [vmem:[#allocation6 + $0x6c] sm:$0xf] %v577
    %610 = vst [vmem:[#allocation6 + $0x70] sm:$0xf] %v578
    %611 = vst [vmem:[#allocation6 + $0x74] sm:$0xf] %v579
    %612 = vst [vmem:[#allocation6 + $0x78] sm:$0xf] %v580
    %613 = vst [vmem:[#allocation6 + $0x7c] sm:$0xf] %v581
    // Predicated region
    $region22: #{tpu_custom_call.1} parent=1 // pred_check
      _
    $region23: #{tpu_custom_call.1} parent=1 // pred_check_branch
      %615 = sbr.rel (0) target = $region25
    $region24: #{tpu_custom_call.1} parent=1 // pred_region
      %617 = vsyncadd [#allocation5], 0
      %s618 = sshll.u32 [#allocation6], 4
      %s619 = int_to_ptr.vmem [resolvable:$true] %s618
      %s620 = sshll.u32 %s4, 4
      %s621 = int_to_ptr.hbm [resolvable:$true] %s620
      %626 = dma.vmem_to_hbm [thread:$0]  %s619, 2048, %s621, [#allocation5], 64, 64, 4
    $region25: #{tpu_custom_call.1} parent=1 // pred_fallthru
      _
    // Predicated region
    $region26: #{tpu_custom_call.1} parent=1 // pred_check
      _
    $region27: #{tpu_custom_call.1} parent=1 // pred_check_branch
      %628 = sbr.rel (0) target = $region29
    $region28: #{tpu_custom_call.1} parent=1 // pred_region
      %630 = dma.done [#allocation5], 2048
    $region29: #{tpu_custom_call.1} parent=1 // pred_fallthru
      _
    %631 = vsyncpa [#allocation4], 1
    %632 = vsyncpa [#allocation5], 1

</llo_original>
